<compile_context>
chip_gen: v7x
topology: tpu7x:2x2x1
jax: 0.10.0
libtpu: 0.0.40
codegen_flags: <defaults>
</compile_context>

<pallas_src>
import jax
import jax.numpy as jnp
from jax.experimental import pallas as pl
from jax.experimental.pallas import tpu as pltpu

_MASK_VALUE = -1e30  # plain Python float: inlined as a literal, never a captured const


def _attention_kernel(q_ref,       # (TB, D)     fp32 precomputed query
                      lens_ref,    # (TB, 1)     int32 valid lengths
                      key_ref,     # (TB, S, D)  fp32 or bf16
                      value_ref,   # (TB, S, D)  fp32 or bf16
                      ctx_ref,     # out: (TB, D)
                      e_ref):      # out: (TB, S)
    q = q_ref[...].astype(jnp.float32)          # (TB, D)
    k = key_ref[...].astype(jnp.float32)        # (TB, S, D)
    v = value_ref[...].astype(jnp.float32)      # (TB, S, D)

    # scores[b, s] = sum_d key[b, s, d] * q[b, d]    (VPU, fp32 accumulate)
    scores = jnp.sum(k * q[:, None, :], axis=-1)            # (TB, S)

    # length mask, vectorized over the whole (TB, S) tile.
    # NOTE: finite -1e30 -> fully-masked rows give uniform weights, not the NaN
    # a torch softmax over all -inf would give (only differs for seq_len == 0).
    pos = jax.lax.broadcasted_iota(jnp.int32, scores.shape, 1)
    scores = jnp.where(pos < lens_ref[...], scores, _MASK_VALUE)

    # softmax over S (dim=2 in the torch code)
    m = jnp.max(scores, axis=-1, keepdims=True)
    p = jnp.exp(scores - m)
    denom = jnp.sum(p, axis=-1, keepdims=True)
    attn = p / denom                                         # (TB, S)

    # context[b, d] = sum_s attn[b, s] * value[b, s, d]   (VPU reduce over S)
    ctx = jnp.sum(attn[:, :, None] * v, axis=1)              # (TB, D)

    ctx_ref[...] = ctx.astype(ctx_ref.dtype)
    e_ref[...] = attn.astype(e_ref.dtype)


def _round_up(x, m):
    return ((x + m - 1) // m) * m


def _vmem_budgets():
    """(working budget for TB sizing, scoped vmem limit cap) per TPU generation."""
    try:
        cap = pltpu.get_tpu_info().vmem_capacity_bytes
    except Exception:
        cap = 128 * 1024 * 1024
    if cap <= 64 * 1024 * 1024:                      # v7x-class: 64 MiB per TC
        return 20 * 1024 * 1024, 40 * 1024 * 1024
    return 44 * 1024 * 1024, 80 * 1024 * 1024        # v5e / v6e: 128 MiB


def _per_row_vmem_bytes(S, D, kv_dtype):
    """Padded-tile VMEM bytes needed per batch row (blocks + in-kernel temporaries)."""
    kv_item = jnp.dtype(kv_dtype).itemsize
    sub = 16 if kv_item == 2 else 8                  # bf16 sublane tile is (16, 128)
    d_pad = _round_up(D, 128)
    kv_blocks = 2 * 2 * _round_up(S, sub) * d_pad * kv_item   # K+V, double-buffered
    f32_temps = 4 * _round_up(S, 8) * d_pad * 4               # k*q, attn*v, upcasts
    small = 2 * (2 * d_pad * 4                                # q + ctx blocks (x2 buf)
                 + _round_up(S, 128) * 4                      # E block
                 + 128 * 4)                                   # lens block (lane-padded)
    return kv_blocks + f32_temps + small


def _choose_tb(B, S, D, kv_dtype):
    """Batch-tile size: multiple of 8 (or == B), padding-aware, generation-aware,
    capped so the grid keeps several pipelined steps whenever B allows."""
    budget, _ = _vmem_budgets()
    tb = max(8, budget // max(_per_row_vmem_bytes(S, D, kv_dtype), 1))
    if B > 8:
        # aim for >= ~3-4 grid steps: overlaps K/V DMA with compute and gives
        # both v7x TensorCores work; per-step overhead (~0.35us) is negligible.
        tb = min(tb, _round_up(pl.cdiv(B, 4), 8))
    tb = min(tb, 1024)
    if tb >= B:
        return B                                    # single full-extent block
    return max(8, (tb // 8) * 8)


def _vmem_limit_bytes(tb, S, D, kv_dtype, limit_cap):
    tb8 = _round_up(tb, 8)
    need = tb8 * _per_row_vmem_bytes(S, D, kv_dtype)
    return int(min(max(need * 5 // 4, 16 * 1024 * 1024), limit_cap))


def attention_forward(hidden, w, bias, key, value, seq_lens, *, tb=None):
    """hidden (B,H), w (D,H), bias (D,), key/value (B,S,D) fp32 or bf16,
    seq_lens (B,) int. Returns context (B,D) fp32 and attention weights E (B,1,S) fp32."""
    B, S, D = key.shape

    # Query projection hoisted out of the kernel: one full-efficiency GEMM
    # instead of B tiny M=1 matmuls against resident weights.
    q = (hidden.astype(jnp.float32) @ w.astype(jnp.float32).T
         + bias.astype(jnp.float32).reshape(1, D))                     # (B, D)

    if tb is None:
        tb = _choose_tb(B, S, D, key.dtype)
    else:
        tb = int(tb)
        if tb >= B:
            tb = B
        else:
            tb = max(8, (tb // 8) * 8)

    lens2d = seq_lens.astype(jnp.int32).reshape(B, 1)
    _, limit_cap = _vmem_budgets()
    grid = (pl.cdiv(B, tb),)

    ctx, e2d = pl.pallas_call(
        _attention_kernel,
        grid=grid,
        in_specs=(
            pl.BlockSpec((tb, D), lambda i: (i, 0)),         # q
            pl.BlockSpec((tb, 1), lambda i: (i, 0)),         # seq_lens
            pl.BlockSpec((tb, S, D), lambda i: (i, 0, 0)),   # key   (no wrapper pad)
            pl.BlockSpec((tb, S, D), lambda i: (i, 0, 0)),   # value (no wrapper pad)
        ),
        out_specs=(
            pl.BlockSpec((tb, D), lambda i: (i, 0)),         # context
            pl.BlockSpec((tb, S), lambda i: (i, 0)),         # E (lane-dense 2-D)
        ),
        out_shape=(
            jax.ShapeDtypeStruct((B, D), jnp.float32),
            jax.ShapeDtypeStruct((B, S), jnp.float32),
        ),
        compiler_params=pltpu.CompilerParams(
            dimension_semantics=("parallel",),
            vmem_limit_bytes=_vmem_limit_bytes(tb, S, D, key.dtype, limit_cap),
        ),
    )(q, lens2d, key, value)

    return ctx, e2d.reshape(B, 1, S)


def _reference(hidden, w, bias, key, value, seq_lens):
    # Plain-JAX reference mirroring the PyTorch forward (fp32 math).
    B, S, D = key.shape
    q = hidden.astype(jnp.float32) @ w.astype(jnp.float32).T + bias.astype(jnp.float32)
    scores = jnp.einsum("bsd,bd->bs", key.astype(jnp.float32), q)      # (B, S)
    pos = jnp.arange(S)[None, :]
    scores = jnp.where(pos < seq_lens[:, None], scores, -jnp.inf)
    E = jax.nn.softmax(scores, axis=-1)
    ctx = jnp.einsum("bs,bsd->bd", E, value.astype(jnp.float32))
    return ctx, E[:, None, :]


if __name__ == "__main__":
    # --- small case matching the module (batch=2, seq=8, hidden=32, out_dim=16) ---
    B, S, H, D = 2, 8, 32, 16
    rng = jax.random.PRNGKey(0)
    k1, k2, k3, k4, k5, k6, k7, k8, k9 = jax.random.split(rng, 9)

    hidden = jax.random.normal(k1, (B, H), dtype=jnp.float32)
    key_t = jax.random.normal(k2, (B, S, D), dtype=jnp.float32)
    value = jax.random.normal(k3, (B, S, D), dtype=jnp.float32)
    # nn.Linear(hidden_dim, out_dim): weight (D, H), bias (D,)
    w = jax.random.normal(k4, (D, H), dtype=jnp.float32) * 0.1
    bias = jax.random.normal(k5, (D,), dtype=jnp.float32) * 0.1
    seq_lens = jnp.array([8, 5], dtype=jnp.int32)

    ctx, E = attention_forward(hidden, w, bias, key_t, value, seq_lens)
    jax.block_until_ready((ctx, E))
    ctx_ref, E_ref = _reference(hidden, w, bias, key_t, value, seq_lens)
    assert jnp.allclose(ctx, ctx_ref, atol=1e-5, rtol=1e-5)
    assert jnp.allclose(E, E_ref, atol=1e-5, rtol=1e-5)

    # --- multi-tile case: grid > 1 (pipelined batch tiles, both v7x TCs get work) ---
    B2 = 24
    hidden2 = jax.random.normal(k6, (B2, H), dtype=jnp.float32)
    key2 = jax.random.normal(k7, (B2, S, D), dtype=jnp.float32)
    value2 = jax.random.normal(k8, (B2, S, D), dtype=jnp.float32)
    seq_lens2 = jax.random.randint(k9, (B2,), 1, S + 1).astype(jnp.int32)

    ctx2, E2 = attention_forward(hidden2, w, bias, key2, value2, seq_lens2)
    jax.block_until_ready((ctx2, E2))
    ctx2_ref, E2_ref = _reference(hidden2, w, bias, key2, value2, seq_lens2)
    assert jnp.allclose(ctx2, ctx2_ref, atol=1e-5, rtol=1e-5)
    assert jnp.allclose(E2, E2_ref, atol=1e-5, rtol=1e-5)

    # --- bf16 K/V path: halves HBM traffic on this bandwidth-bound kernel ---
    key2_bf = key2.astype(jnp.bfloat16)
    value2_bf = value2.astype(jnp.bfloat16)
    ctx3, E3 = attention_forward(hidden2, w, bias, key2_bf, value2_bf, seq_lens2)
    jax.block_until_ready((ctx3, E3))
    ctx3_ref, E3_ref = _reference(hidden2, w, bias, key2_bf, value2_bf, seq_lens2)
    assert jnp.allclose(ctx3, ctx3_ref, atol=1e-3, rtol=1e-3)
    assert jnp.allclose(E3, E3_ref, atol=1e-3, rtol=1e-3)

    print("KERNEL_OK")
</pallas_src>

<mosaic_0001>
module attributes {stable_mosaic.version = 11 : i64} {
  func.func @_attention_kernel(%arg0: i32, %arg1: memref<2x16xf32, #tpu.memory_space<vmem>>, %arg2: memref<2x1xi32, #tpu.memory_space<vmem>>, %arg3: memref<2x8x16xf32, #tpu.memory_space<vmem>>, %arg4: memref<2x8x16xf32, #tpu.memory_space<vmem>>, %arg5: memref<2x16xf32, #tpu.memory_space<vmem>>, %arg6: memref<2x8xf32, #tpu.memory_space<vmem>>) attributes {dimension_semantics = [#tpu.dimension_semantics<parallel>], iteration_bounds = array<i64: 1>, scalar_prefetch = 0 : i64, scratch_operands = 0 : i64, tpu.core_type = #tpu.core_type<tc>, window_params = [{transform_indices = @transform_0, window_bounds = array<i64: 2, 16>}, {transform_indices = @transform_1, window_bounds = array<i64: 2, 1>}, {transform_indices = @transform_2, window_bounds = array<i64: 2, 8, 16>}, {transform_indices = @transform_3, window_bounds = array<i64: 2, 8, 16>}, {transform_indices = @transform_4, window_bounds = array<i64: 2, 16>}, {transform_indices = @transform_5, window_bounds = array<i64: 2, 8>}]} {
    %c0 = arith.constant 0 : index
    %c0_0 = arith.constant 0 : index
    %0 = vector.load %arg1[%c0, %c0_0] : memref<2x16xf32, #tpu.memory_space<vmem>>, vector<2x16xf32>
    %c0_1 = arith.constant 0 : index
    %c0_2 = arith.constant 0 : index
    %c0_3 = arith.constant 0 : index
    %1 = vector.load %arg3[%c0_1, %c0_2, %c0_3] : memref<2x8x16xf32, #tpu.memory_space<vmem>>, vector<2x8x16xf32>
    %c0_4 = arith.constant 0 : index
    %c0_5 = arith.constant 0 : index
    %c0_6 = arith.constant 0 : index
    %2 = vector.load %arg4[%c0_4, %c0_5, %c0_6] : memref<2x8x16xf32, #tpu.memory_space<vmem>>, vector<2x8x16xf32>
    %3 = vector.shape_cast %0 : vector<2x16xf32> to vector<2x1x16xf32>
    %4 = vector.broadcast %3 : vector<2x1x16xf32> to vector<2x8x16xf32>
    %5 = arith.mulf %1, %4 : vector<2x8x16xf32>
    %cst = arith.constant dense<0.000000e+00> : vector<2x8xf32>
    %6 = vector.multi_reduction <add>, %5, %cst [2] : vector<2x8x16xf32> to vector<2x8xf32>
    %7 = tpu.iota {dimensions = array<i32: 1>} : vector<2x8xi32>
    %c0_7 = arith.constant 0 : index
    %c0_8 = arith.constant 0 : index
    %8 = vector.load %arg2[%c0_7, %c0_8] : memref<2x1xi32, #tpu.memory_space<vmem>>, vector<2x1xi32>
    %9 = vector.broadcast %8 : vector<2x1xi32> to vector<2x8xi32>
    %10 = arith.cmpi slt, %7, %9 : vector<2x8xi32>
    %cst_9 = arith.constant -1.000000e+30 : f32
    %11 = vector.broadcast %cst_9 : f32 to vector<2x8xf32>
    %12 = arith.select %10, %6, %11 : vector<2x8xi1>, vector<2x8xf32>
    %cst_10 = arith.constant dense<0xFF800000> : vector<2xf32>
    %13 = vector.multi_reduction <maximumf>, %12, %cst_10 [1] : vector<2x8xf32> to vector<2xf32>
    %14 = vector.shape_cast %13 : vector<2xf32> to vector<2x1xf32>
    %15 = vector.broadcast %14 : vector<2x1xf32> to vector<2x8xf32>
    %16 = arith.subf %12, %15 : vector<2x8xf32>
    %17 = math.exp %16 : vector<2x8xf32>
    %cst_11 = arith.constant dense<0.000000e+00> : vector<2xf32>
    %18 = vector.multi_reduction <add>, %17, %cst_11 [1] : vector<2x8xf32> to vector<2xf32>
    %19 = vector.shape_cast %18 : vector<2xf32> to vector<2x1xf32>
    %20 = vector.broadcast %19 : vector<2x1xf32> to vector<2x8xf32>
    %21 = arith.divf %17, %20 : vector<2x8xf32>
    %22 = vector.shape_cast %21 : vector<2x8xf32> to vector<2x8x1xf32>
    %23 = vector.broadcast %22 : vector<2x8x1xf32> to vector<2x8x16xf32>
    %24 = arith.mulf %23, %2 : vector<2x8x16xf32>
    %cst_12 = arith.constant dense<0.000000e+00> : vector<2x16xf32>
    %25 = vector.multi_reduction <add>, %24, %cst_12 [1] : vector<2x8x16xf32> to vector<2x16xf32>
    %c0_13 = arith.constant 0 : index
    %c0_14 = arith.constant 0 : index
    %26 = vector.load %arg5[%c0_13, %c0_14] : memref<2x16xf32, #tpu.memory_space<vmem>>, vector<2x16xf32>
    tpu.vector_store %arg5[%c0_13, %c0_14], %25 {strides = array<i32>} : memref<2x16xf32, #tpu.memory_space<vmem>>, vector<2x16xf32>,
    %c0_15 = arith.constant 0 : index
    %c0_16 = arith.constant 0 : index
    %27 = vector.load %arg6[%c0_15, %c0_16] : memref<2x8xf32, #tpu.memory_space<vmem>>, vector<2x8xf32>
    tpu.vector_store %arg6[%c0_15, %c0_16], %21 {strides = array<i32>} : memref<2x8xf32, #tpu.memory_space<vmem>>, vector<2x8xf32>,
    return
  }
  func.func @transform_0(%arg0: i32) -> (i32, i32) {
    %c0_i32 = arith.constant 0 : i32
    %c0_i32_0 = arith.constant 0 : i32
    return %arg0, %c0_i32 : i32, i32
  }
  func.func @transform_1(%arg0: i32) -> (i32, i32) {
    %c0_i32 = arith.constant 0 : i32
    %c0_i32_0 = arith.constant 0 : i32
    return %arg0, %c0_i32 : i32, i32
  }
  func.func @transform_2(%arg0: i32) -> (i32, i32, i32) {
    %c0_i32 = arith.constant 0 : i32
    %c0_i32_0 = arith.constant 0 : i32
    %c0_i32_1 = arith.constant 0 : i32
    return %arg0, %c0_i32, %c0_i32_0 : i32, i32, i32
  }
  func.func @transform_3(%arg0: i32) -> (i32, i32, i32) {
    %c0_i32 = arith.constant 0 : i32
    %c0_i32_0 = arith.constant 0 : i32
    %c0_i32_1 = arith.constant 0 : i32
    return %arg0, %c0_i32, %c0_i32_0 : i32, i32, i32
  }
  func.func @transform_4(%arg0: i32) -> (i32, i32) {
    %c0_i32 = arith.constant 0 : i32
    %c0_i32_0 = arith.constant 0 : i32
    return %arg0, %c0_i32 : i32, i32
  }
  func.func @transform_5(%arg0: i32) -> (i32, i32) {
    %c0_i32 = arith.constant 0 : i32
    %c0_i32_0 = arith.constant 0 : i32
    return %arg0, %c0_i32 : i32, i32
  }
}

</mosaic_0001>

<llo_original>
// kernel: tpu_custom_call.1
$region0: #{tpu_custom_call.1}
  #allocation0 [shape = 'u32[]', space=smem, size = 0x4, offset = 0x4, fixed_abs, tag = 'smem constant byte address 0x4 - core index']
  #allocation1 [shape = 'u32[144,128]{1,0:T(1,128)}', space=vmem, size = 0x12000, scoped, tag = 'internal scratch']
  %s0 = inlined_call_operand.vmem [shape: f32[2,16], index: 0, kind: input, shape index: {}]
  %s1 = inlined_call_operand.vmem [shape: s32[2,1], index: 1, kind: input, shape index: {}]
  %s2 = inlined_call_operand.hbm [shape: f32[2,8,16], index: 2, kind: input, shape index: {}]
  %s3 = inlined_call_operand.hbm [shape: f32[2,8,16], index: 3, kind: input, shape index: {}]
  %s4 = inlined_call_operand.hbm [shape: f32[2,16], index: 4, kind: output, shape index: {0}]
  %s5 = inlined_call_operand.hbm [shape: f32[2,8], index: 5, kind: output, shape index: {1}]
  %6 = xla_tuple %s4, %s5
  %s7 = sld [smem:[#allocation0]]
  $region42: #{tpu_custom_call.1} parent=0
    _
  %s9 = ssub.s32 1, %s7
  %s10 = scalar_select 0, %s9, %s7
  $region1: #{tpu_custom_call.1} parent=0
    #allocation2 [shape = 'u8[8192]{0}', space=vmem, size = 0x2000, scoped, tag = 'input window, operand 2, single buffered']
    #allocation3 [shape = 's32[1]{0}', space=sflag, size = 0x4, scoped, tag = 'scoped memory for tpu_custom_call.1']
    #allocation4 [shape = 's32[1]{0}', space=sflag, size = 0x4, scoped, tag = 'scoped memory for tpu_custom_call.1']
    #allocation5 [shape = 'u8[8192]{0}', space=vmem, size = 0x2000, scoped, tag = 'input window, operand 3, single buffered']
    #allocation6 [shape = 's32[1]{0}', space=sflag, size = 0x4, scoped, tag = 'scoped memory for tpu_custom_call.1']
    #allocation7 [shape = 'u8[1024]{0}', space=vmem, size = 0x400, scoped, tag = 'output window, operand 0, single buffered']
    #allocation8 [shape = 'u8[1024]{0}', space=vmem, size = 0x400, scoped, tag = 'output window, operand 1, single buffered']
    #allocation9 [shape = 's32[1]{0}', space=sflag, size = 0x4, scoped, tag = 'scoped memory for tpu_custom_call.1']
    %11 = vsyncpa [#allocation3], 0
    %12 = vsyncpa [#allocation6], 0
    %13 = vsyncpa [#allocation4], 0
    %14 = vsyncpa [#allocation9], 0
    // Predicated region
    $region2: #{tpu_custom_call.1} parent=1 // pred_check
      _
    $region3: #{tpu_custom_call.1} parent=1 // pred_check_branch
      %16 = sbr.rel (0) target = $region5
    $region4: #{tpu_custom_call.1} parent=1 // pred_region
      _
    $region5: #{tpu_custom_call.1} parent=1 // pred_fallthru
      _
    // Predicated region
    $region6: #{tpu_custom_call.1} parent=1 // pred_check
      _
    $region7: #{tpu_custom_call.1} parent=1 // pred_check_branch
      %18 = sbr.rel (0) target = $region9
    $region8: #{tpu_custom_call.1} parent=1 // pred_region
      _
    $region9: #{tpu_custom_call.1} parent=1 // pred_fallthru
      _
    // Predicated region
    $region10: #{tpu_custom_call.1} parent=1 // pred_check
      _
    $region11: #{tpu_custom_call.1} parent=1 // pred_check_branch
      %20 = sbr.rel (0) target = $region13
    $region12: #{tpu_custom_call.1} parent=1 // pred_region
      %s22 = ssub.s32 256, 256
      %23 = vsyncadd [#allocation3], %s22
      %s24 = sshll.u32 [#allocation2], 4
      %s25 = int_to_ptr.vmem [resolvable:$true] %s24
      %30 = dma.hbm_to_vmem [thread:$0]  %s2, 256, %s25, [#allocation3], 128, 128, 8
    $region13: #{tpu_custom_call.1} parent=1 // pred_fallthru
      _
    // Predicated region
    $region14: #{tpu_custom_call.1} parent=1 // pred_check
      _
    $region15: #{tpu_custom_call.1} parent=1 // pred_check_branch
      %32 = sbr.rel (0) target = $region17
    $region16: #{tpu_custom_call.1} parent=1 // pred_region
      %s34 = ssub.s32 256, 256
      %35 = vsyncadd [#allocation6], %s34
      %s36 = sshll.u32 [#allocation5], 4
      %s37 = int_to_ptr.vmem [resolvable:$true] %s36
      %42 = dma.hbm_to_vmem [thread:$0]  %s3, 256, %s37, [#allocation6], 128, 128, 8
    $region17: #{tpu_custom_call.1} parent=1 // pred_fallthru
      _
    // Predicated region
    $region18: #{tpu_custom_call.1} parent=1 // pred_check
      _
    $region19: #{tpu_custom_call.1} parent=1 // pred_check_branch
      %44 = sbr.rel (0) target = $region21
    $region20: #{tpu_custom_call.1} parent=1 // pred_region
      %45 = dma.done [#allocation3], 256
    $region21: #{tpu_custom_call.1} parent=1 // pred_fallthru
      _
    // Predicated region
    $region22: #{tpu_custom_call.1} parent=1 // pred_check
      _
    $region23: #{tpu_custom_call.1} parent=1 // pred_check_branch
      %47 = sbr.rel (0) target = $region25
    $region24: #{tpu_custom_call.1} parent=1 // pred_region
      %48 = dma.done [#allocation6], 256
    $region25: #{tpu_custom_call.1} parent=1 // pred_fallthru
      _
    %v49 = vld [vmem:[%s0] sm:$0x3]
    %v50 = vld [vmem:[#allocation2] sm:$0xff]
    %v51 = vld [vmem:[#allocation2 + $0x8] sm:$0xff]
    %v52 = vld [vmem:[#allocation5] sm:$0xff]
    %v53 = vld [vmem:[#allocation5 + $0x8] sm:$0xff]
    %v56 = vunpack.c.l.s4 1966171168
    %v57 = vunpack.c.0.s8 %v56
    %v58 = vlaneseq
    %v59 = vshrl.u32 %v58, 7
    %v60 = vsub.s32 %v57, %v59
    %v61 = vrot.slane %v49, %v60
    %v62 = vcombine.high %v61, %v61
    %v64 = vunpack.c.l.s4 1966171168
    %v65 = vunpack.c.0.s8 %v64
    %v66 = vlaneseq
    %v67 = vshrl.u32 %v66, 7
    %v68 = vsub.s32 %v65, %v67
    %v69 = vrot.slane %v61, %v68
    %v71 = vunpack.c.l.s4 1966171168
    %v72 = vunpack.c.0.s8 %v71
    %v73 = vlaneseq
    %v74 = vshrl.u32 %v73, 7
    %v75 = vsub.s32 %v72, %v74
    %v76 = vrot.slane %v62, %v75
    %v77 = vlaneseq
    %v78 = vshrl.u32 %v77, 7
    %v79 = vsub.s32 0, %v78
    %v80 = vrot.slane %v69, %v79
    %v81 = vlaneseq
    %v82 = vshrl.u32 %v81, 7
    %v83 = vsub.s32 0, %v82
    %v84 = vrot.slane %v76, %v83
    %v87 = vmul.f32 %v50, %v80
    %v88 = vmul.f32 %v51, %v84
    %vm89 = vcmask 130048
    %v90 = vsel %vm89, %v87, 0.0
    %91 = vadd.xlane.f32.xlu0 %v90
    %v92 = vpop.xlane.xlu0 %91
    %v93 = vsel %vm89, %v88, 0.0
    %94 = vadd.xlane.f32.xlu0 %v93
    %v95 = vpop.xlane.xlu0 %94
    %v96 = vlaneseq
    %v97 = vand.u32 %v96, 127
    %v98 = vld [vmem:[%s1] sm:$0x3]
    %99 = vset.pattern.permute.xlu0 0
    %100 = vperm.xlu0 %99, %v98
    %v101 = vpop.permute.xlu0 %100
    %vm102 = vcmp.lt.s32.totalorder %v97, %v101
    %v105 = vlaneseq
    %v106 = vshrl.u32 %v105, 7
    %v107 = vsub.s32 %v97, %v106
    %v108 = vrot.slane %v92, %v107
    %v109 = vlaneseq
    %v110 = vshrl.u32 %v109, 7
    %v111 = vsub.s32 %v97, %v110
    %v112 = vrot.slane %v95, %v111
    %vm113 = vcmask 1041409
    %v114 = vsel %vm113, %v112, %v108
    %v116 = vsel %vm102, %v114, -1e+30
    %vm117 = vcmask 58368
    %v118 = vsel %vm117, %v116, -inf
    %119 = vmax.xlane.f32.xlu0 %v118
    %v120 = vpop.xlane.xlu0 %119
    %v121 = vsub.f32 %v116, %v120
    %v122 = vmul.f32 %v121, 1.442695
    %v123 = vpow.pop %v122
    %v124 = vsel %vm117, %v123, 0.0
    %125 = vadd.xlane.f32.xlu0 %v124
    %v126 = vpop.xlane.xlu0 %125
    %v127 = vrcp.pop %v126
    %v128 = vmul.f32 %v123, %v127
    %v129 = vlaneseq
    %v130 = vshrl.u32 %v129, 7
    %v131 = vsub.s32 0, %v130
    %v132 = vrot.slane %v128, %v131
    %134 = vbcast.lane.b32.xlu0 %v132, 256
    %v135 = vpop.permute.xlu0 %134
    %v136 = vlaneseq
    %v137 = vshrl.u32 %v136, 7
    %v138 = vsub.s32 1, %v137
    %v139 = vrot.slane %v128, %v138
    %141 = vbcast.lane.b32.xlu0 %v139, 256
    %v142 = vpop.permute.xlu0 %141
    %v143 = vmul.f32 %v135, %v52
    %v144 = vmul.f32 %v142, %v53
    %v145 = vsel %vm89, %v143, 0.0
    %v146 = vrot.slane %v145, 4
    %v147 = vadd.f32 %v145, %v146
    %v148 = vrot.slane %v147, 2
    %v149 = vadd.f32 %v147, %v148
    %v150 = vrot.slane %v149, 1
    %v151 = vadd.f32 %v149, %v150
    %v152 = vsel %vm89, %v144, 0.0
    %v153 = vrot.slane %v152, 4
    %v154 = vadd.f32 %v152, %v153
    %v155 = vrot.slane %v154, 2
    %v156 = vadd.f32 %v154, %v155
    %v157 = vrot.slane %v156, 1
    %v158 = vadd.f32 %v156, %v157
    %v161 = vsel %vm113, %v158, %v151
    %vm163 = vcmask 123904
    %164 = vst.msk [vmem:[#allocation7] sm:$0x3] %vm163, %v161
    %165 = vst.msk [vmem:[#allocation8] sm:$0x3] %vm117, %v128
    // Predicated region
    $region26: #{tpu_custom_call.1} parent=1 // pred_check
      _
    $region27: #{tpu_custom_call.1} parent=1 // pred_check_branch
      %167 = sbr.rel (0) target = $region29
    $region28: #{tpu_custom_call.1} parent=1 // pred_region
      %s169 = ssub.s32 32, 32
      %170 = vsyncadd [#allocation4], %s169
      %s172 = sshll.u32 [#allocation7], 4
      %s173 = int_to_ptr.vmem [resolvable:$true] %s172
      %175 = dma.vmem_to_hbm [thread:$0]  %s173, 32, %s4, [#allocation4]
    $region29: #{tpu_custom_call.1} parent=1 // pred_fallthru
      _
    // Predicated region
    $region30: #{tpu_custom_call.1} parent=1 // pred_check
      _
    $region31: #{tpu_custom_call.1} parent=1 // pred_check_branch
      %177 = sbr.rel (0) target = $region33
    $region32: #{tpu_custom_call.1} parent=1 // pred_region
      %s179 = ssub.s32 32, 32
      %180 = vsyncadd [#allocation9], %s179
      %s182 = sshll.u32 [#allocation8], 4
      %s183 = int_to_ptr.vmem [resolvable:$true] %s182
      %185 = dma.vmem_to_hbm [thread:$0]  %s183, 32, %s5, [#allocation9]
    $region33: #{tpu_custom_call.1} parent=1 // pred_fallthru
      _
    // Predicated region
    $region34: #{tpu_custom_call.1} parent=1 // pred_check
      _
    $region35: #{tpu_custom_call.1} parent=1 // pred_check_branch
      %187 = sbr.rel (0) target = $region37
    $region36: #{tpu_custom_call.1} parent=1 // pred_region
      %188 = dma.done [#allocation4], 32
    $region37: #{tpu_custom_call.1} parent=1 // pred_fallthru
      _
    // Predicated region
    $region38: #{tpu_custom_call.1} parent=1 // pred_check
      _
    $region39: #{tpu_custom_call.1} parent=1 // pred_check_branch
      %190 = sbr.rel (0) target = $region41
    $region40: #{tpu_custom_call.1} parent=1 // pred_region
      %191 = dma.done [#allocation9], 32
    $region41: #{tpu_custom_call.1} parent=1 // pred_fallthru
      _
    %192 = vsyncpa [#allocation3], 1
    %193 = vsyncpa [#allocation6], 1
    %194 = vsyncpa [#allocation4], 1
    %195 = vsyncpa [#allocation9], 1

</llo_original>
